<compile_context>
chip_gen: v6e
topology: v6e:2x2x1
jax: 0.10.0
libtpu: 0.0.40
codegen_flags: <defaults>
</compile_context>

<pallas_src>
import functools

import jax
import jax.numpy as jnp
from jax.experimental import pallas as pl
from jax.experimental.pallas import tpu as pltpu


def _round_up(n, m):
    return ((n + m - 1) // m) * m


def _tpu_defaults():
    """Per-generation (tm_target, th_max, vmem_capacity_bytes, num_tensorcores)."""
    kind = ""
    try:
        kind = jax.devices()[0].device_kind.lower()
    except Exception:
        pass
    vmem_cap = None
    try:
        vmem_cap = int(pltpu.get_tpu_info().vmem_capacity_bytes)
    except Exception:
        vmem_cap = None
    if "v7" in kind or "7x" in kind:
        # 64 MiB VMEM, 2 TensorCores, crossover ~310-380 flops/byte.
        return 512, 512, (vmem_cap or (64 << 20)), 2
    if "v6" in kind:
        # 128 MiB VMEM, crossover ~640 flops/byte.
        return 1024, 1024, (vmem_cap or (128 << 20)), 1
    if "v5" in kind:
        # 128 MiB VMEM, crossover ~240 flops/byte, 4x128x128 MXU.
        return 256, 1024, (vmem_cap or (128 << 20)), 1
    # Unknown backend (e.g. interpret mode): conservative defaults.
    return 512, 1024, (vmem_cap or (64 << 20)), 1


def _pick_hidden_tile(H, th_max):
    """Largest multiple of 128 that divides H and is <= th_max; else full H."""
    if H % 128 != 0:
        return H
    cand = (min(th_max, H) // 128) * 128
    while cand >= 128 and H % cand != 0:
        cand -= 128
    return cand if cand >= 128 else H


def mlp_kernel(x_ref, w1_ref, b1_ref, w2_ref, b2_ref, o_ref, *scratch):
    """Grid = (row tiles, hidden tiles). Axis 1 is the H (= 4*D) reduction."""
    # f32 accumulator: a VMEM scratch, or the (f32, k-resident) output block.
    acc_ref = scratch[0] if scratch else o_ref
    k = pl.program_id(1)

    # First matmul + bias + ReLU in f32.  x is cast to the MXU dtype in-kernel
    # (VPU work hidden under the MXU) so the wrapper never writes a bf16 copy.
    x = x_ref[...].astype(w1_ref.dtype)
    h = jnp.dot(x, w1_ref[...], preferred_element_type=jnp.float32)
    h = jnp.maximum(h + b1_ref[...].astype(jnp.float32), 0.0)        # (tm, th)

    # Second matmul: this H-slice's contribution, accumulated in f32.
    contrib = jnp.dot(h.astype(w2_ref.dtype), w2_ref[...],
                      preferred_element_type=jnp.float32)

    @pl.when(k == 0)
    def _():
        acc_ref[...] = contrib            # skip zero-init + reload on step 0

    @pl.when(k != 0)
    def _():
        acc_ref[...] += contrib

    @pl.when(k == pl.num_programs(1) - 1)
    def _():
        # b2 is added exactly once, in the finalize step.
        o_ref[...] = (acc_ref[...] + b2_ref[...].astype(jnp.float32)
                      ).astype(o_ref.dtype)
    # TODO(synk): dropout is identity in eval mode; training-mode dropout would
    # need pltpu.prng_seed/prng_random_bits + 1/(1-p) scaling and is omitted.


@functools.partial(jax.jit, static_argnames=("tm_target", "th_max", "vmem_cap",
                                             "num_tc", "compute_dtype"))
def _mlp_forward_impl(x, w1, b1, w2, b2, *, tm_target, th_max, vmem_cap,
                      num_tc, compute_dtype):
    """x: (B, T, D); w1: (D, 4D); b1: (1, 4D); w2: (4D, D); b2: (1, D)."""
    B, T, D = x.shape
    H = w1.shape[1]                        # 4 * D
    M = B * T
    out_dtype = x.dtype

    bpe_c = jnp.dtype(compute_dtype).itemsize
    bpe_x = jnp.dtype(x.dtype).itemsize
    bpe_o = jnp.dtype(out_dtype).itemsize
    use_scratch = jnp.dtype(out_dtype) != jnp.dtype(jnp.float32)
    sub = 16 if bpe_c == 2 else 8

    # ---- row tile (sets arithmetic intensity) -----------------------------
    if M >= tm_target:
        tm_eff = tm_target
    elif M >= 96:
        tm_eff = _round_up(M, 128)         # pad small-but-real M to MXU width
    else:
        tm_eff = _round_up(M, sub)         # tiny M: sublane-align only
    M_pad = _round_up(M, tm_eff)

    # v7x: both TensorCores need at least one row tile on the "parallel" axis.
    if num_tc > 1 and M_pad // tm_eff < num_tc and tm_eff >= 2 * 128:
        tm_eff = max(128, ((tm_eff // num_tc) // 128) * 128)
        M_pad = _round_up(M, tm_eff)

    # ---- VMEM budget (generation-aware, below physical capacity) ----------
    phys_budget = max(min(int(vmem_cap * 0.875), vmem_cap - (8 << 20)), 16 << 20)

    def needed(tm_, th_):
        # Double-buffered pipeline copies of each input/output block.
        buf = 2 * (tm_ * D * bpe_x          # x tile
                   + D * th_ * bpe_c        # w1 tile
                   + th_ * 4                # b1 tile
                   + th_ * D * bpe_c        # w2 tile
                   + D * 4                  # b2 tile
                   + tm_ * D * bpe_o)       # out tile
        scr = tm_ * D * 4 if use_scratch else 0
        # In-kernel intermediates: f32 h, its bf16 cast, the cast x tile.
        interm = tm_ * th_ * 4 + tm_ * th_ * bpe_c + tm_ * D * bpe_c
        return buf + scr + interm + (2 << 20)       # compiler headroom

    # ---- hidden tile: weight-resident fast path if it fits ----------------
    if needed(tm_eff, H) <= phys_budget:
        th = H                               # weights DMA'd from HBM exactly once
    else:
        th = _pick_hidden_tile(H, th_max)
        while needed(tm_eff, th) > phys_budget:
            if th > 128 and H % 128 == 0:
                smaller = _pick_hidden_tile(H, th // 2)
                if smaller < th:
                    th = smaller
                    continue
            if tm_eff > 128:
                tm_eff = max(128, ((tm_eff // 2) // 128) * 128)
                M_pad = _round_up(M, tm_eff)
                continue
            break                             # accept; vmem_limit still clamped

    # ---- operands (no wrapper-side dtype casts of x / weights) ------------
    x2 = x.reshape(M, D)
    if M_pad != M:
        x2 = jnp.pad(x2, ((0, M_pad - M), (0, 0)))
    w1c = w1 if w1.dtype == jnp.dtype(compute_dtype) else w1.astype(compute_dtype)
    w2c = w2 if w2.dtype == jnp.dtype(compute_dtype) else w2.astype(compute_dtype)
    b1c = b1.reshape(1, H)
    b2c = b2.reshape(1, D)

    vmem_bytes = int(min(max(needed(tm_eff, th), 16 << 20), phys_budget))

    n_row_tiles = M_pad // tm_eff
    weight_passes = 1 if th == H else n_row_tiles
    cost = pl.CostEstimate(
        flops=int(4 * M_pad * D * H),          # two matmuls, 2*M*D*H flops each
        transcendentals=0,
        bytes_accessed=int(M_pad * D * bpe_x
                           + weight_passes * (w1c.size + w2c.size) * bpe_c
                           + b1c.size * b1c.dtype.itemsize
                           + b2c.size * b2c.dtype.itemsize
                           + M_pad * D * bpe_o))

    scratch_shapes = ([pltpu.VMEM((tm_eff, D), jnp.float32)]
                      if use_scratch else [])

    out = pl.pallas_call(
        mlp_kernel,
        out_shape=jax.ShapeDtypeStruct((M_pad, D), out_dtype),
        grid_spec=pltpu.PrefetchScalarGridSpec(
            num_scalar_prefetch=0,
            grid=(M_pad // tm_eff, H // th),
            in_specs=[
                pl.BlockSpec((tm_eff, D), lambda i, k: (i, 0)),   # x row tile
                pl.BlockSpec((D, th), lambda i, k: (0, k)),       # w1 H-slice
                pl.BlockSpec((1, th), lambda i, k: (0, k)),       # b1 H-slice
                pl.BlockSpec((th, D), lambda i, k: (k, 0)),       # w2 H-slice
                pl.BlockSpec((1, D), lambda i, k: (0, 0)),        # b2 (full)
            ],
            out_specs=pl.BlockSpec((tm_eff, D), lambda i, k: (i, 0)),
            scratch_shapes=scratch_shapes,
        ),
        compiler_params=pltpu.CompilerParams(
            dimension_semantics=("parallel", "arbitrary"),
            vmem_limit_bytes=vmem_bytes),
        cost_estimate=cost,
    )(x2, w1c, b1c, w2c, b2c)

    return out[:M].reshape(B, T, D)


def mlp_forward(x, w1, b1, w2, b2, *, tm=None, th_max=None,
                compute_dtype=jnp.bfloat16):
    """Public entry point; picks per-generation tiling defaults if not given."""
    d_tm, d_th, vmem_cap, num_tc = _tpu_defaults()
    return _mlp_forward_impl(
        x, w1, b1, w2, b2,
        tm_target=int(tm) if tm is not None else int(d_tm),
        th_max=int(th_max) if th_max is not None else int(d_th),
        vmem_cap=int(vmem_cap), num_tc=int(num_tc),
        compute_dtype=compute_dtype)


def init_params(key, n_embd, dtype=jnp.float32):
    """Deterministic init mimicking PyTorch nn.Linear (uniform +-1/sqrt(fan_in))."""
    hid = 4 * n_embd
    k1, k2, k3, k4 = jax.random.split(key, 4)
    bound1 = 1.0 / (n_embd ** 0.5)
    bound2 = 1.0 / (hid ** 0.5)
    # stored already transposed relative to nn.Linear: (in, out)
    w1 = jax.random.uniform(k1, (n_embd, hid), dtype, -bound1, bound1)
    b1 = jax.random.uniform(k2, (1, hid), dtype, -bound1, bound1)
    w2 = jax.random.uniform(k3, (hid, n_embd), dtype, -bound2, bound2)
    b2 = jax.random.uniform(k4, (1, n_embd), dtype, -bound2, bound2)
    return w1, b1, w2, b2


def mlp_reference(x, w1, b1, w2, b2):
    h = jnp.maximum(jnp.einsum('btd,dh->bth', x, w1) + b1[0], 0.0)
    return jnp.einsum('bth,hd->btd', h, w2) + b2[0]


if __name__ == "__main__":
    B, T, n_embd = 2, 8, 32     # small shapes: batch=2, seq=8, hidden=32
    key = jax.random.PRNGKey(0)
    kx, kp = jax.random.split(key)
    x = jax.random.normal(kx, (B, T, n_embd), jnp.float32)
    w1, b1, w2, b2 = init_params(kp, n_embd)

    ref = mlp_reference(x, w1, b1, w2, b2)

    # Exactness check: f32 compute path must match the f32 reference tightly.
    out_f32 = jax.block_until_ready(
        mlp_forward(x, w1, b1, w2, b2, compute_dtype=jnp.float32))
    assert out_f32.shape == (B, T, n_embd)
    assert jnp.allclose(out_f32, ref, atol=1e-5, rtol=1e-5), "f32 mismatch vs reference"

    # Performance path: weights "stored" in bf16 (cast once here, not per call);
    # x stays f32 and is cast inside the kernel; accumulation is f32.
    w1_bf, w2_bf = w1.astype(jnp.bfloat16), w2.astype(jnp.bfloat16)
    out_bf16 = jax.block_until_ready(
        mlp_forward(x, w1_bf, b1, w2_bf, b2, compute_dtype=jnp.bfloat16))
    assert out_bf16.shape == (B, T, n_embd)
    assert jnp.allclose(out_bf16, ref, atol=5e-2, rtol=5e-2), "bf16 mismatch vs reference"

    print("KERNEL_OK")
</pallas_src>

<mosaic_0001>
module attributes {stable_mosaic.version = 11 : i64} {
  func.func @mlp_kernel(%arg0: i32, %arg1: i32, %arg2: memref<16x32xf32, #tpu.memory_space<vmem>>, %arg3: memref<32x128xf32, #tpu.memory_space<vmem>>, %arg4: memref<1x128xf32, #tpu.memory_space<vmem>>, %arg5: memref<128x32xf32, #tpu.memory_space<vmem>>, %arg6: memref<1x32xf32, #tpu.memory_space<vmem>>, %arg7: memref<16x32xf32, #tpu.memory_space<vmem>>) attributes {dimension_semantics = [#tpu.dimension_semantics<parallel>, #tpu.dimension_semantics<arbitrary>], iteration_bounds = array<i64: 1, 1>, scalar_prefetch = 0 : i64, scratch_operands = 0 : i64, tpu.core_type = #tpu.core_type<tc>, window_params = [{transform_indices = @transform_0, window_bounds = array<i64: 16, 32>}, {transform_indices = @transform_1, window_bounds = array<i64: 32, 128>}, {transform_indices = @transform_2, window_bounds = array<i64: 1, 128>}, {transform_indices = @transform_3, window_bounds = array<i64: 128, 32>}, {pipeline_mode = #tpu.pipeline_mode<synchronous>, transform_indices = @transform_4, window_bounds = array<i64: 1, 32>}, {transform_indices = @transform_5, window_bounds = array<i64: 16, 32>}]} {
    %c0 = arith.constant 0 : index
    %c0_0 = arith.constant 0 : index
    %0 = vector.load %arg2[%c0, %c0_0] : memref<16x32xf32, #tpu.memory_space<vmem>>, vector<16x32xf32>
    %c0_1 = arith.constant 0 : index
    %c0_2 = arith.constant 0 : index
    %1 = vector.load %arg3[%c0_1, %c0_2] : memref<32x128xf32, #tpu.memory_space<vmem>>, vector<32x128xf32>
    %cst = arith.constant dense<0.000000e+00> : vector<16x128xf32>
    %2 = tpu.matmul %0, %1, %cst {dimension_numbers = #tpu.dot_dimension_numbers<[1], [0], [0], [1], [0, 0, 1, 1], [], []>} : vector<16x32xf32>, vector<32x128xf32>, vector<16x128xf32> -> vector<16x128xf32>
    %c0_3 = arith.constant 0 : index
    %c0_4 = arith.constant 0 : index
    %3 = vector.load %arg4[%c0_3, %c0_4] : memref<1x128xf32, #tpu.memory_space<vmem>>, vector<1x128xf32>
    %4 = vector.broadcast %3 : vector<1x128xf32> to vector<16x128xf32>
    %5 = arith.addf %2, %4 : vector<16x128xf32>
    %cst_5 = arith.constant 0.000000e+00 : f32
    %6 = vector.broadcast %cst_5 : f32 to vector<16x128xf32>
    %7 = arith.maximumf %5, %6 : vector<16x128xf32>
    %c0_6 = arith.constant 0 : index
    %c0_7 = arith.constant 0 : index
    %8 = vector.load %arg5[%c0_6, %c0_7] : memref<128x32xf32, #tpu.memory_space<vmem>>, vector<128x32xf32>
    %cst_8 = arith.constant dense<0.000000e+00> : vector<16x32xf32>
    %9 = tpu.matmul %7, %8, %cst_8 {dimension_numbers = #tpu.dot_dimension_numbers<[1], [0], [0], [1], [0, 0, 1, 1], [], []>} : vector<16x128xf32>, vector<128x32xf32>, vector<16x32xf32> -> vector<16x32xf32>
    %c0_i32 = arith.constant 0 : i32
    %10 = arith.cmpi eq, %arg1, %c0_i32 : i32
    %11 = arith.extui %10 : i1 to i32
    %c0_i32_9 = arith.constant 0 : i32
    %12 = arith.cmpi ne, %11, %c0_i32_9 : i32
    scf.if %12 {
      %c0_14 = arith.constant 0 : index
      %c0_15 = arith.constant 0 : index
      %19 = vector.load %arg7[%c0_14, %c0_15] : memref<16x32xf32, #tpu.memory_space<vmem>>, vector<16x32xf32>
      tpu.vector_store %arg7[%c0_14, %c0_15], %9 {strides = array<i32>} : memref<16x32xf32, #tpu.memory_space<vmem>>, vector<16x32xf32>,
    } else {
    }
    %c0_i32_10 = arith.constant 0 : i32
    %13 = arith.cmpi ne, %arg1, %c0_i32_10 : i32
    %14 = arith.extui %13 : i1 to i32
    %c0_i32_11 = arith.constant 0 : i32
    %15 = arith.cmpi ne, %14, %c0_i32_11 : i32
    scf.if %15 {
      %c0_14 = arith.constant 0 : index
      %c0_15 = arith.constant 0 : index
      %19 = vector.load %arg7[%c0_14, %c0_15] : memref<16x32xf32, #tpu.memory_space<vmem>>, vector<16x32xf32>
      %20 = arith.addf %19, %9 : vector<16x32xf32>
      %c0_16 = arith.constant 0 : index
      %c0_17 = arith.constant 0 : index
      %21 = vector.load %arg7[%c0_16, %c0_17] : memref<16x32xf32, #tpu.memory_space<vmem>>, vector<16x32xf32>
      tpu.vector_store %arg7[%c0_16, %c0_17], %20 {strides = array<i32>} : memref<16x32xf32, #tpu.memory_space<vmem>>, vector<16x32xf32>,
    } else {
    }
    %c0_i32_12 = arith.constant 0 : i32
    %16 = arith.cmpi eq, %arg1, %c0_i32_12 : i32
    %17 = arith.extui %16 : i1 to i32
    %c0_i32_13 = arith.constant 0 : i32
    %18 = arith.cmpi ne, %17, %c0_i32_13 : i32
    scf.if %18 {
      %c0_14 = arith.constant 0 : index
      %c0_15 = arith.constant 0 : index
      %19 = vector.load %arg7[%c0_14, %c0_15] : memref<16x32xf32, #tpu.memory_space<vmem>>, vector<16x32xf32>
      %c0_16 = arith.constant 0 : index
      %c0_17 = arith.constant 0 : index
      %20 = vector.load %arg6[%c0_16, %c0_17] : memref<1x32xf32, #tpu.memory_space<vmem>>, vector<1x32xf32>
      %21 = vector.broadcast %20 : vector<1x32xf32> to vector<16x32xf32>
      %22 = arith.addf %19, %21 : vector<16x32xf32>
      %c0_18 = arith.constant 0 : index
      %c0_19 = arith.constant 0 : index
      %23 = vector.load %arg7[%c0_18, %c0_19] : memref<16x32xf32, #tpu.memory_space<vmem>>, vector<16x32xf32>
      tpu.vector_store %arg7[%c0_18, %c0_19], %22 {strides = array<i32>} : memref<16x32xf32, #tpu.memory_space<vmem>>, vector<16x32xf32>,
    } else {
    }
    return
  }
  func.func @transform_0(%arg0: i32, %arg1: i32) -> (i32, i32) {
    %c0_i32 = arith.constant 0 : i32
    %c0_i32_0 = arith.constant 0 : i32
    return %arg0, %c0_i32 : i32, i32
  }
  func.func @transform_1(%arg0: i32, %arg1: i32) -> (i32, i32) {
    %c0_i32 = arith.constant 0 : i32
    %c0_i32_0 = arith.constant 0 : i32
    return %c0_i32, %arg1 : i32, i32
  }
  func.func @transform_2(%arg0: i32, %arg1: i32) -> (i32, i32) {
    %c0_i32 = arith.constant 0 : i32
    %c0_i32_0 = arith.constant 0 : i32
    return %c0_i32, %arg1 : i32, i32
  }
  func.func @transform_3(%arg0: i32, %arg1: i32) -> (i32, i32) {
    %c0_i32 = arith.constant 0 : i32
    %c0_i32_0 = arith.constant 0 : i32
    return %arg1, %c0_i32 : i32, i32
  }
  func.func @transform_4(%arg0: i32, %arg1: i32) -> (i32, i32) {
    %c0_i32 = arith.constant 0 : i32
    %c0_i32_0 = arith.constant 0 : i32
    %c0_i32_1 = arith.constant 0 : i32
    return %c0_i32, %c0_i32_0 : i32, i32
  }
  func.func @transform_5(%arg0: i32, %arg1: i32) -> (i32, i32) {
    %c0_i32 = arith.constant 0 : i32
    %c0_i32_0 = arith.constant 0 : i32
    return %arg0, %c0_i32 : i32, i32
  }
}

</mosaic_0001>

<llo_original>
// kernel: _mlp_forward_impl.1
$region0: #{_mlp_forward_impl.1}
  #allocation0 [shape = 'u32[]', space=smem, size = 0x4, offset = 0x4, fixed_abs, tag = 'smem constant byte address 0x4 - core index']
  #allocation1 [shape = 'u32[144,128]{1,0:T(1,128)}', space=vmem, size = 0x12000, scoped, tag = 'internal scratch']
  %s0 = inlined_call_operand.vmem [shape: f32[16,32], index: 0, kind: input, shape index: {}]
  %s1 = inlined_call_operand.vmem [shape: f32[32,128], index: 1, kind: input, shape index: {}]
  %s2 = inlined_call_operand.vmem [shape: f32[1,128], index: 2, kind: input, shape index: {}]
  %s3 = inlined_call_operand.vmem [shape: f32[128,32], index: 3, kind: input, shape index: {}]
  %s4 = inlined_call_operand.vmem [shape: f32[1,32], index: 4, kind: input, shape index: {}]
  %s5 = inlined_call_operand.hbm [shape: f32[16,32], index: 5, kind: output, shape index: {}]
  %s6 = sld [smem:[#allocation0]]
  $region42: #{_mlp_forward_impl.1} parent=0
    _
  %s8 = ssub.s32 1, %s6
  %s9 = scalar_select 0, %s8, %s6
  $region1: #{_mlp_forward_impl.1} parent=0
    #allocation2 [shape = 'u8[8192]{0}', space=vmem, size = 0x2000, scoped, tag = 'output window, operand 0, single buffered']
    #allocation3 [shape = 's32[1]{0}', space=sflag, size = 0x4, scoped, tag = 'scoped memory for _mlp_forward_impl.1']
    %10 = vsyncpa [#allocation3], 0
    // Predicated region
    $region2: #{_mlp_forward_impl.1} parent=1 // pred_check
      _
    $region3: #{_mlp_forward_impl.1} parent=1 // pred_check_branch
      %12 = sbr.rel (0) target = $region5
    $region4: #{_mlp_forward_impl.1} parent=1 // pred_region
      _
    $region5: #{_mlp_forward_impl.1} parent=1 // pred_fallthru
      _
    // Predicated region
    $region6: #{_mlp_forward_impl.1} parent=1 // pred_check
      _
    $region7: #{_mlp_forward_impl.1} parent=1 // pred_check_branch
      %14 = sbr.rel (0) target = $region9
    $region8: #{_mlp_forward_impl.1} parent=1 // pred_region
      _
    $region9: #{_mlp_forward_impl.1} parent=1 // pred_fallthru
      _
    // Predicated region
    $region10: #{_mlp_forward_impl.1} parent=1 // pred_check
      _
    $region11: #{_mlp_forward_impl.1} parent=1 // pred_check_branch
      %16 = sbr.rel (0) target = $region13
    $region12: #{_mlp_forward_impl.1} parent=1 // pred_region
      _
    $region13: #{_mlp_forward_impl.1} parent=1 // pred_fallthru
      _
    // Predicated region
    $region14: #{_mlp_forward_impl.1} parent=1 // pred_check
      _
    $region15: #{_mlp_forward_impl.1} parent=1 // pred_check_branch
      %18 = sbr.rel (0) target = $region17
    $region16: #{_mlp_forward_impl.1} parent=1 // pred_region
      _
    $region17: #{_mlp_forward_impl.1} parent=1 // pred_fallthru
      _
    // Predicated region
    $region18: #{_mlp_forward_impl.1} parent=1 // pred_check
      _
    $region19: #{_mlp_forward_impl.1} parent=1 // pred_check_branch
      %20 = sbr.rel (0) target = $region21
    $region20: #{_mlp_forward_impl.1} parent=1 // pred_region
      _
    $region21: #{_mlp_forward_impl.1} parent=1 // pred_fallthru
      _
    %v21 = vld [vmem:[%s0] sm:$0xff]
    %v22 = vld [vmem:[%s0 + $0x8] sm:$0xff]
    %v23 = vld [vmem:[%s1] sm:$0xff]
    %v24 = vld [vmem:[%s1 + $0x8] sm:$0xff]
    %v25 = vld [vmem:[%s1 + $0x10] sm:$0xff]
    %v26 = vld [vmem:[%s1 + $0x18] sm:$0xff]
    %v27 = vld [vmem:[%s2] sm:$0x1]
    %v29 = vlaneseq
    %v30 = vshrl.u32 %v29, 7
    %v31 = vsub.s32 0, %v30
    %v32 = vrot.slane %v27, %v31
    %vm34 = vcmask 261120
    %v36 = vsel %vm34, %v21, 0
    %v39 = vsel %vm34, %v22, 0
    %41 = vmatprep.subr.mxu0 0.0
    %42 = vmatpush1.msra.mxu0 0.0
    %43 = vmatprep.subr.mxu0 0.0
    %44 = vmatpush1.msra.mxu0 0.0
    %45 = vmatprep.subr.mxu0 0.0
    %46 = vmatpush1.msra.mxu0 0.0
    %47 = vmatprep.subr.mxu0 0.0
    %48 = vmatpush1.msra.mxu0 0.0
    %49 = vmatprep.subr.mxu0 0.0
    %50 = vmatpush1.msra.mxu0 0.0
    %51 = vmatprep.subr.mxu0 0.0
    %52 = vmatpush1.msra.mxu0 0.0
    %53 = vmatprep.subr.mxu0 0.0
    %54 = vmatpush1.msra.mxu0 0.0
    %55 = vmatprep.subr.mxu0 0.0
    %56 = vmatpush1.msra.mxu0 0.0
    %57 = vmatprep.subr.mxu0 0.0
    %58 = vmatpush1.msra.mxu0 0.0
    %59 = vmatprep.subr.mxu0 0.0
    %60 = vmatpush1.msra.mxu0 0.0
    %61 = vmatprep.subr.mxu0 0.0
    %62 = vmatpush1.msra.mxu0 0.0
    %63 = vmatprep.subr.mxu0 0.0
    %64 = vmatpush1.msra.mxu0 0.0
    %65 = vmatprep.subr.mxu0 0.0
    %66 = vmatpush1.msra.mxu0 %v26
    %67 = vmatprep.subr.mxu0 0.0
    %68 = vmatpush1.msra.mxu0 %v25
    %69 = vmatprep.subr.mxu0 0.0
    %70 = vmatpush1.msra.mxu0 %v24
    %71 = vmatprep.subr.mxu0 0.0
    %72 = vmatpush1.msra.mxu0 %v23
    %73 = vmatprep.subr.mxu0 0.0
    %74 = vmatpush2.msra.mxu0 0.0
    %75 = vmatprep.subr.mxu0 0.0
    %76 = vmatpush2.msra.mxu0 0.0
    %77 = vmatprep.subr.mxu0 0.0
    %78 = vmatpush2.msra.mxu0 0.0
    %79 = vmatprep.subr.mxu0 0.0
    %80 = vmatpush2.msra.mxu0 0.0
    %81 = vmatprep.subr.mxu0 0.0
    %82 = vmatpush2.msra.mxu0 0.0
    %83 = vmatprep.subr.mxu0 0.0
    %84 = vmatpush2.msra.mxu0 0.0
    %85 = vmatprep.subr.mxu0 0.0
    %86 = vmatpush2.msra.mxu0 0.0
    %87 = vmatprep.subr.mxu0 0.0
    %88 = vmatpush2.msra.mxu0 0.0
    %89 = vmatprep.subr.mxu0 0.0
    %90 = vmatpush2.msra.mxu0 0.0
    %91 = vmatprep.subr.mxu0 0.0
    %92 = vmatpush2.msra.mxu0 0.0
    %93 = vmatprep.subr.mxu0 0.0
    %94 = vmatpush2.msra.mxu0 0.0
    %95 = vmatprep.subr.mxu0 0.0
    %96 = vmatpush2.msra.mxu0 0.0
    %97 = vmatprep.subr.mxu0 0.0
    %98 = vmatpush2.msra.mxu0 0.0
    %99 = vmatprep.subr.mxu0 0.0
    %100 = vmatpush2.msra.mxu0 0.0
    %101 = vmatprep.subr.mxu0 0.0
    %102 = vmatpush2.msra.mxu0 0.0
    %103 = vmatprep.subr.mxu0 0.0
    %104 = vmatpush2.msra.mxu0 0.0
    %105 = vmatprep.mubr.f32.mxu0 0.0
    %106 = vmatmul.mubr.f32.gmra.mxu0 %v36
    %v107 = vpop.f32.mrf.mxu0
    %v108 = vadd.f32 %v32, %v107
    %v109 = vpop.f32.mrf.mxu0
    %110 = vmatprep.mubr.f32.mxu0 0.0
    %111 = vmatmul.mubr.f32.gmra.mxu0 %v39
    %v112 = vpop.f32.mrf.mxu0
    %v113 = vadd.f32 %v32, %v112
    %v114 = vpop.f32.mrf.mxu0
    %115 = vdwg.mxu0
    %v116 = vmax.f32 %v108, 0.0
    %v117 = vmax.f32 %v113, 0.0
    %v118 = vld [vmem:[%s3] sm:$0xff]
    %v119 = vld [vmem:[%s3 + $0x8] sm:$0xff]
    %v120 = vld [vmem:[%s3 + $0x10] sm:$0xff]
    %v121 = vld [vmem:[%s3 + $0x18] sm:$0xff]
    %v122 = vld [vmem:[%s3 + $0x20] sm:$0xff]
    %v123 = vld [vmem:[%s3 + $0x28] sm:$0xff]
    %v124 = vld [vmem:[%s3 + $0x30] sm:$0xff]
    %v125 = vld [vmem:[%s3 + $0x38] sm:$0xff]
    %v126 = vld [vmem:[%s3 + $0x40] sm:$0xff]
    %v127 = vld [vmem:[%s3 + $0x48] sm:$0xff]
    %v128 = vld [vmem:[%s3 + $0x50] sm:$0xff]
    %v129 = vld [vmem:[%s3 + $0x58] sm:$0xff]
    %v130 = vld [vmem:[%s3 + $0x60] sm:$0xff]
    %v131 = vld [vmem:[%s3 + $0x68] sm:$0xff]
    %v132 = vld [vmem:[%s3 + $0x70] sm:$0xff]
    %v133 = vld [vmem:[%s3 + $0x78] sm:$0xff]
    %134 = vmatprep.subr.mxu0 0.0
    %135 = vmatpush1.msra.mxu0 %v133
    %136 = vmatprep.subr.mxu0 0.0
    %137 = vmatpush1.msra.mxu0 %v132
    %138 = vmatprep.subr.mxu0 0.0
    %139 = vmatpush1.msra.mxu0 %v131
    %140 = vmatprep.subr.mxu0 0.0
    %141 = vmatpush1.msra.mxu0 %v130
    %142 = vmatprep.subr.mxu0 0.0
    %143 = vmatpush1.msra.mxu0 %v129
    %144 = vmatprep.subr.mxu0 0.0
    %145 = vmatpush1.msra.mxu0 %v128
    %146 = vmatprep.subr.mxu0 0.0
    %147 = vmatpush1.msra.mxu0 %v127
    %148 = vmatprep.subr.mxu0 0.0
    %149 = vmatpush1.msra.mxu0 %v126
    %150 = vmatprep.subr.mxu0 0.0
    %151 = vmatpush1.msra.mxu0 %v125
    %152 = vmatprep.subr.mxu0 0.0
    %153 = vmatpush1.msra.mxu0 %v124
    %154 = vmatprep.subr.mxu0 0.0
    %155 = vmatpush1.msra.mxu0 %v123
    %156 = vmatprep.subr.mxu0 0.0
    %157 = vmatpush1.msra.mxu0 %v122
    %158 = vmatprep.subr.mxu0 0.0
    %159 = vmatpush1.msra.mxu0 %v121
    %160 = vmatprep.subr.mxu0 0.0
    %161 = vmatpush1.msra.mxu0 %v120
    %162 = vmatprep.subr.mxu0 0.0
    %163 = vmatpush1.msra.mxu0 %v119
    %164 = vmatprep.subr.mxu0 0.0
    %165 = vmatpush1.msra.mxu0 %v118
    %166 = vmatprep.subr.mxu0 0.0
    %167 = vmatpush2.msra.mxu0 0.0
    %168 = vmatprep.subr.mxu0 0.0
    %169 = vmatpush2.msra.mxu0 0.0
    %170 = vmatprep.subr.mxu0 0.0
    %171 = vmatpush2.msra.mxu0 0.0
    %172 = vmatprep.subr.mxu0 0.0
    %173 = vmatpush2.msra.mxu0 0.0
    %174 = vmatprep.subr.mxu0 0.0
    %175 = vmatpush2.msra.mxu0 0.0
    %176 = vmatprep.subr.mxu0 0.0
    %177 = vmatpush2.msra.mxu0 0.0
    %178 = vmatprep.subr.mxu0 0.0
    %179 = vmatpush2.msra.mxu0 0.0
    %180 = vmatprep.subr.mxu0 0.0
    %181 = vmatpush2.msra.mxu0 0.0
    %182 = vmatprep.subr.mxu0 0.0
    %183 = vmatpush2.msra.mxu0 0.0
    %184 = vmatprep.subr.mxu0 0.0
    %185 = vmatpush2.msra.mxu0 0.0
    %186 = vmatprep.subr.mxu0 0.0
    %187 = vmatpush2.msra.mxu0 0.0
    %188 = vmatprep.subr.mxu0 0.0
    %189 = vmatpush2.msra.mxu0 0.0
    %190 = vmatprep.subr.mxu0 0.0
    %191 = vmatpush2.msra.mxu0 0.0
    %192 = vmatprep.subr.mxu0 0.0
    %193 = vmatpush2.msra.mxu0 0.0
    %194 = vmatprep.subr.mxu0 0.0
    %195 = vmatpush2.msra.mxu0 0.0
    %196 = vmatprep.subr.mxu0 0.0
    %197 = vmatpush2.msra.mxu0 0.0
    %198 = vmatprep.mubr.f32.mxu0 0.0
    %199 = vmatmul.mubr.f32.gmra.mxu0 %v116
    %v200 = vpop.f32.mrf.mxu0
    %v201 = vadd.f32 0.0, %v200
    %v202 = vpop.f32.mrf.mxu0
    %203 = vmatprep.mubr.f32.mxu0 0.0
    %204 = vmatmul.mubr.f32.gmra.mxu0 %v117
    %v205 = vpop.f32.mrf.mxu0
    %v206 = vadd.f32 0.0, %v205
    %v207 = vpop.f32.mrf.mxu0
    %208 = vdwg.mxu0
    %p209 = scmp.eq.s32.totalorder 0, 0
    // Predicated region
    $region22: #{_mlp_forward_impl.1} parent=1 // pred_check
      %p210 = pneg %p209
    $region23: #{_mlp_forward_impl.1} parent=1 // pred_check_branch
      %212 = sbr.rel (%p210) target = $region25
    $region24: #{_mlp_forward_impl.1} parent=1 // pred_region
      %213 = vst.msk [vmem:[#allocation2] sm:$0xff] %vm34, %v201
      %214 = vst.msk [vmem:[#allocation2 + $0x8] sm:$0xff] %vm34, %v206
    $region25: #{_mlp_forward_impl.1} parent=1 // pred_fallthru
      _
    %p215 = scmp.ne.s32.totalorder 0, 0
    // Predicated region
    $region26: #{_mlp_forward_impl.1} parent=1 // pred_check
      %p216 = pneg %p215
    $region27: #{_mlp_forward_impl.1} parent=1 // pred_check_branch
      %218 = sbr.rel (%p216) target = $region29
    $region28: #{_mlp_forward_impl.1} parent=1 // pred_region
      %v219 = vld [vmem:[#allocation2] sm:$0xff]
      %v220 = vld [vmem:[#allocation2 + $0x8] sm:$0xff]
      %v221 = vadd.f32 %v219, %v201
      %v222 = vadd.f32 %v220, %v206
      %223 = vst.msk [vmem:[#allocation2] sm:$0xff] %vm34, %v221
      %224 = vst.msk [vmem:[#allocation2 + $0x8] sm:$0xff] %vm34, %v222
    $region29: #{_mlp_forward_impl.1} parent=1 // pred_fallthru
      _
    // Predicated region
    $region30: #{_mlp_forward_impl.1} parent=1 // pred_check
      %p225 = pneg %p209
    $region31: #{_mlp_forward_impl.1} parent=1 // pred_check_branch
      %227 = sbr.rel (%p225) target = $region33
    $region32: #{_mlp_forward_impl.1} parent=1 // pred_region
      %v228 = vld [vmem:[#allocation2] sm:$0xff]
      %v229 = vld [vmem:[#allocation2 + $0x8] sm:$0xff]
      %v230 = vld [vmem:[%s4] sm:$0x1]
      %v232 = vlaneseq
      %v233 = vshrl.u32 %v232, 7
      %v234 = vsub.s32 0, %v233
      %v235 = vrot.slane %v230, %v234
      %v237 = vadd.f32 %v228, %v235
      %v238 = vadd.f32 %v229, %v235
      %239 = vst.msk [vmem:[#allocation2] sm:$0xff] %vm34, %v237
      %240 = vst.msk [vmem:[#allocation2 + $0x8] sm:$0xff] %vm34, %v238
    $region33: #{_mlp_forward_impl.1} parent=1 // pred_fallthru
      _
    // Predicated region
    $region34: #{_mlp_forward_impl.1} parent=1 // pred_check
      _
    $region35: #{_mlp_forward_impl.1} parent=1 // pred_check_branch
      %242 = sbr.rel (0) target = $region37
    $region36: #{_mlp_forward_impl.1} parent=1 // pred_region
      %s244 = ssub.s32 256, 256
      %245 = vsyncadd [#allocation3], %s244
      %s246 = sshll.u32 [#allocation2], 4
      %s247 = int_to_ptr.vmem [resolvable:$true] %s246
      %252 = dma.vmem_to_hbm [thread:$0]  %s247, 256, %s5, [#allocation3], 128, 128, 8
    $region37: #{_mlp_forward_impl.1} parent=1 // pred_fallthru
      _
    // Predicated region
    $region38: #{_mlp_forward_impl.1} parent=1 // pred_check
      _
    $region39: #{_mlp_forward_impl.1} parent=1 // pred_check_branch
      %254 = sbr.rel (0) target = $region41
    $region40: #{_mlp_forward_impl.1} parent=1 // pred_region
      %255 = dma.done [#allocation3], 256
    $region41: #{_mlp_forward_impl.1} parent=1 // pred_fallthru
      _
    %256 = vsyncpa [#allocation3], 1

</llo_original>
